<compile_context>
chip_gen: v5e
topology: v5e:2x2
jax: 0.10.0
libtpu: 0.0.40
codegen_flags: <defaults>
</compile_context>

<pallas_src>
import functools
import math

import jax
import jax.numpy as jnp
import numpy as np
from jax import lax
from jax.experimental import pallas as pl
from jax.experimental.pallas import tpu as pltpu


def _sinkhorn_kernel(corr_ref, out_ref, *, power, max_iter, use_mxu):
    # corr_ref / out_ref block shape: (Bblk, N, M)
    corr = corr_ref[...].astype(jnp.float32)          # f32 working copy in VMEM
    bblk, n, m = corr.shape

    p = jnp.float32(power)
    eps = jnp.float32(1e-8)
    log_prob1 = jnp.float32(-math.log(n))             # log(1/N)
    log_prob2 = jnp.float32(-math.log(m))             # log(1/M)

    a0 = jnp.full((bblk, n, 1), 1.0 / n, dtype=jnp.float32)
    # b0 is only a carry placeholder: b is always recomputed before first use.
    b0 = jnp.zeros((bblk, 1, m), dtype=jnp.float32)

    def body(_, carry):
        a, b = carry
        # KTa = corr^T @ a, kept as a (Bblk, 1, M) row per batch entry.
        if use_mxu:
            kta = jnp.einsum("bnl,bnm->blm", a, corr,
                             preferred_element_type=jnp.float32)
        else:
            kta = jnp.sum(corr * a, axis=1, keepdims=True)
        # b = (prob2 / (KTa + eps)) ** p, fused into one exp/log pair on the EUP.
        b = jnp.exp(p * (log_prob2 - jnp.log(kta + eps)))
        # Kb = corr @ b, kept as an (Bblk, N, 1) column per batch entry.
        if use_mxu:
            kb = jnp.einsum("bnm,blm->bnl", corr, b,
                            preferred_element_type=jnp.float32)
        else:
            kb = jnp.sum(corr * b, axis=2, keepdims=True)
        a = jnp.exp(p * (log_prob1 - jnp.log(kb + eps)))
        return a, b

    # max_iter is a compile-time constant (e.g. 5): fully unroll so adjacent
    # iterations' vld/VPU/XLU/EUP work can interleave.
    a, b = lax.fori_loop(0, max_iter, body, (a0, b0), unroll=True)

    # T = a * corr * b^T   (a broadcasts over columns, b over rows)
    out_ref[...] = (a * corr * b).astype(out_ref.dtype)


def _choose_bblk(B, N, M, in_itemsize, out_itemsize, vmem_budget_bytes):
    """Largest divisor of B whose block footprint fits the VMEM budget while
    keeping at least 2 grid steps (megacore / v7x 2-TC) whenever B >= 2."""
    def footprint(bblk):
        tile = bblk * N * M
        # double-buffered input + double-buffered output + f32 working copy
        return 2 * tile * in_itemsize + 2 * tile * out_itemsize + tile * 4

    best = 1
    for bblk in range(1, B + 1):
        if B % bblk:
            continue
        if footprint(bblk) > vmem_budget_bytes:
            continue
        if B >= 2 and (B // bblk) < 2:
            continue
        best = bblk
    return best


def sinkhorn(corr, epsilon, gamma, max_iter):
    """Pallas implementation of the PyTorch Sinkhorn.forward."""
    if max_iter == 0:
        return corr
    power = float(gamma) / (float(gamma) + float(epsilon))
    B, N, M = corr.shape

    in_itemsize = jnp.dtype(corr.dtype).itemsize
    out_itemsize = in_itemsize

    # Budget sized for v7x's 64 MiB physical VMEM (v5e/v6e have 128 MiB, so this
    # is always safe) with headroom for the f32 working copy and small vectors.
    vmem_budget = 24 * 1024 * 1024
    bblk = _choose_bblk(B, N, M, in_itemsize, out_itemsize, vmem_budget)

    # MXU matvec path only pays off once both dims reach MXU scale.
    use_mxu = min(N, M) >= 128

    tile = bblk * N * M
    footprint = 2 * tile * in_itemsize + 2 * tile * out_itemsize + tile * 4
    vmem_limit = int(min(64 << 20, max(32 << 20, 2 * footprint)))

    in_spec_kwargs = {}
    if int(max_iter) <= 2:
        # With only 1-2 iterations the HBM read is exposed; deepen pipelining.
        in_spec_kwargs["pipeline_mode"] = pl.Buffered(3)

    kernel = functools.partial(
        _sinkhorn_kernel, power=power, max_iter=int(max_iter), use_mxu=use_mxu)

    # NOTE: for M < 128 the output store is lane-masked (vst.msk); folding pairs
    # of batch entries into the lane dim would make it lane-dense but changes
    # the in-kernel reduction axes -- left as a follow-up optimization.
    return pl.pallas_call(
        kernel,
        out_shape=jax.ShapeDtypeStruct((B, N, M), corr.dtype),
        grid_spec=pltpu.PrefetchScalarGridSpec(
            num_scalar_prefetch=0,
            grid=(B // bblk,),
            in_specs=[pl.BlockSpec((bblk, N, M), lambda i: (i, 0, 0),
                                   **in_spec_kwargs)],
            out_specs=pl.BlockSpec((bblk, N, M), lambda i: (i, 0, 0)),
        ),
        compiler_params=pltpu.CompilerParams(
            dimension_semantics=("parallel",),
            vmem_limit_bytes=vmem_limit),
    )(corr)


def sinkhorn_ref(corr, epsilon, gamma, max_iter):
    """Pure-JAX reference mirroring the PyTorch code exactly."""
    if max_iter == 0:
        return corr
    power = gamma / (gamma + epsilon)
    B, N, M = corr.shape
    a = jnp.ones((B, N, 1), corr.dtype) / N
    prob1 = jnp.ones((B, N, 1), corr.dtype) / N
    prob2 = jnp.ones((B, M, 1), corr.dtype) / M
    b = None
    for _ in range(max_iter):
        KTa = jnp.einsum("bnm,bnk->bmk", corr, a)
        b = jnp.power(prob2 / (KTa + 1e-8), power)
        Kb = jnp.einsum("bnm,bmk->bnk", corr, b)
        a = jnp.power(prob1 / (Kb + 1e-8), power)
    return a * corr * jnp.transpose(b, (0, 2, 1))


if __name__ == "__main__":
    key = jax.random.PRNGKey(0)
    B, N, M = 2, 32, 64
    # Correlation matrix is positive (as produced upstream by exp(-cost/eps)).
    corr = jax.random.uniform(key, (B, N, M), dtype=jnp.float32,
                              minval=0.05, maxval=1.0)

    epsilon, gamma, max_iter = 0.03, 0.3, 5

    out = sinkhorn(corr, epsilon, gamma, max_iter)
    out = jax.block_until_ready(out)

    ref = jax.block_until_ready(sinkhorn_ref(corr, epsilon, gamma, max_iter))
    np.testing.assert_allclose(np.asarray(out), np.asarray(ref),
                               rtol=1e-4, atol=1e-5)

    print("KERNEL_OK")
</pallas_src>

<mosaic_0001>
module attributes {stable_mosaic.version = 11 : i64} {
  func.func @_sinkhorn_kernel(%arg0: i32, %arg1: memref<1x32x64xf32, #tpu.memory_space<vmem>>, %arg2: memref<1x32x64xf32, #tpu.memory_space<vmem>>) attributes {dimension_semantics = [#tpu.dimension_semantics<parallel>], iteration_bounds = array<i64: 2>, scalar_prefetch = 0 : i64, scratch_operands = 0 : i64, tpu.core_type = #tpu.core_type<tc>, window_params = [{transform_indices = @transform_0, window_bounds = array<i64: 1, 32, 64>}, {transform_indices = @transform_1, window_bounds = array<i64: 1, 32, 64>}]} {
    %c0 = arith.constant 0 : index
    %c0_0 = arith.constant 0 : index
    %c0_1 = arith.constant 0 : index
    %0 = vector.load %arg1[%c0, %c0_0, %c0_1] : memref<1x32x64xf32, #tpu.memory_space<vmem>>, vector<1x32x64xf32>
    %cst = arith.constant 3.125000e-02 : f32
    %1 = vector.broadcast %cst : f32 to vector<1x32x1xf32>
    %cst_2 = arith.constant 0.000000e+00 : f32
    %2 = vector.broadcast %cst_2 : f32 to vector<1x1x64xf32>
    %cst_3 = arith.constant 9.99999993E-9 : f32
    %cst_4 = arith.constant -4.15888309 : f32
    %cst_5 = arith.constant 0.909090936 : f32
    %cst_6 = arith.constant -3.46573591 : f32
    %c0_i32 = arith.constant 0 : i32
    %3 = vector.broadcast %1 : vector<1x32x1xf32> to vector<1x32x64xf32>
    %4 = arith.mulf %0, %3 : vector<1x32x64xf32>
    %cst_7 = arith.constant dense<0.000000e+00> : vector<1x64xf32>
    %5 = vector.multi_reduction <add>, %4, %cst_7 [1] : vector<1x32x64xf32> to vector<1x64xf32>
    %6 = vector.shape_cast %5 : vector<1x64xf32> to vector<1x1x64xf32>
    %7 = vector.broadcast %cst_3 : f32 to vector<1x1x64xf32>
    %8 = arith.addf %6, %7 : vector<1x1x64xf32>
    %9 = math.log %8 : vector<1x1x64xf32>
    %10 = vector.broadcast %cst_4 : f32 to vector<1x1x64xf32>
    %11 = arith.subf %10, %9 : vector<1x1x64xf32>
    %12 = vector.broadcast %cst_5 : f32 to vector<1x1x64xf32>
    %13 = arith.mulf %12, %11 : vector<1x1x64xf32>
    %14 = math.exp %13 : vector<1x1x64xf32>
    %15 = vector.broadcast %14 : vector<1x1x64xf32> to vector<1x32x64xf32>
    %16 = arith.mulf %0, %15 : vector<1x32x64xf32>
    %cst_8 = arith.constant dense<0.000000e+00> : vector<1x32xf32>
    %17 = vector.multi_reduction <add>, %16, %cst_8 [2] : vector<1x32x64xf32> to vector<1x32xf32>
    %18 = vector.shape_cast %17 : vector<1x32xf32> to vector<1x32x1xf32>
    %19 = vector.broadcast %cst_3 : f32 to vector<1x32x1xf32>
    %20 = arith.addf %18, %19 : vector<1x32x1xf32>
    %21 = math.log %20 : vector<1x32x1xf32>
    %22 = vector.broadcast %cst_6 : f32 to vector<1x32x1xf32>
    %23 = arith.subf %22, %21 : vector<1x32x1xf32>
    %24 = vector.broadcast %cst_5 : f32 to vector<1x32x1xf32>
    %25 = arith.mulf %24, %23 : vector<1x32x1xf32>
    %26 = math.exp %25 : vector<1x32x1xf32>
    %c1_i32 = arith.constant 1 : i32
    %27 = vector.broadcast %26 : vector<1x32x1xf32> to vector<1x32x64xf32>
    %28 = arith.mulf %0, %27 : vector<1x32x64xf32>
    %cst_9 = arith.constant dense<0.000000e+00> : vector<1x64xf32>
    %29 = vector.multi_reduction <add>, %28, %cst_9 [1] : vector<1x32x64xf32> to vector<1x64xf32>
    %30 = vector.shape_cast %29 : vector<1x64xf32> to vector<1x1x64xf32>
    %31 = vector.broadcast %cst_3 : f32 to vector<1x1x64xf32>
    %32 = arith.addf %30, %31 : vector<1x1x64xf32>
    %33 = math.log %32 : vector<1x1x64xf32>
    %34 = vector.broadcast %cst_4 : f32 to vector<1x1x64xf32>
    %35 = arith.subf %34, %33 : vector<1x1x64xf32>
    %36 = vector.broadcast %cst_5 : f32 to vector<1x1x64xf32>
    %37 = arith.mulf %36, %35 : vector<1x1x64xf32>
    %38 = math.exp %37 : vector<1x1x64xf32>
    %39 = vector.broadcast %38 : vector<1x1x64xf32> to vector<1x32x64xf32>
    %40 = arith.mulf %0, %39 : vector<1x32x64xf32>
    %cst_10 = arith.constant dense<0.000000e+00> : vector<1x32xf32>
    %41 = vector.multi_reduction <add>, %40, %cst_10 [2] : vector<1x32x64xf32> to vector<1x32xf32>
    %42 = vector.shape_cast %41 : vector<1x32xf32> to vector<1x32x1xf32>
    %43 = vector.broadcast %cst_3 : f32 to vector<1x32x1xf32>
    %44 = arith.addf %42, %43 : vector<1x32x1xf32>
    %45 = math.log %44 : vector<1x32x1xf32>
    %46 = vector.broadcast %cst_6 : f32 to vector<1x32x1xf32>
    %47 = arith.subf %46, %45 : vector<1x32x1xf32>
    %48 = vector.broadcast %cst_5 : f32 to vector<1x32x1xf32>
    %49 = arith.mulf %48, %47 : vector<1x32x1xf32>
    %50 = math.exp %49 : vector<1x32x1xf32>
    %c2_i32 = arith.constant 2 : i32
    %51 = vector.broadcast %50 : vector<1x32x1xf32> to vector<1x32x64xf32>
    %52 = arith.mulf %0, %51 : vector<1x32x64xf32>
    %cst_11 = arith.constant dense<0.000000e+00> : vector<1x64xf32>
    %53 = vector.multi_reduction <add>, %52, %cst_11 [1] : vector<1x32x64xf32> to vector<1x64xf32>
    %54 = vector.shape_cast %53 : vector<1x64xf32> to vector<1x1x64xf32>
    %55 = vector.broadcast %cst_3 : f32 to vector<1x1x64xf32>
    %56 = arith.addf %54, %55 : vector<1x1x64xf32>
    %57 = math.log %56 : vector<1x1x64xf32>
    %58 = vector.broadcast %cst_4 : f32 to vector<1x1x64xf32>
    %59 = arith.subf %58, %57 : vector<1x1x64xf32>
    %60 = vector.broadcast %cst_5 : f32 to vector<1x1x64xf32>
    %61 = arith.mulf %60, %59 : vector<1x1x64xf32>
    %62 = math.exp %61 : vector<1x1x64xf32>
    %63 = vector.broadcast %62 : vector<1x1x64xf32> to vector<1x32x64xf32>
    %64 = arith.mulf %0, %63 : vector<1x32x64xf32>
    %cst_12 = arith.constant dense<0.000000e+00> : vector<1x32xf32>
    %65 = vector.multi_reduction <add>, %64, %cst_12 [2] : vector<1x32x64xf32> to vector<1x32xf32>
    %66 = vector.shape_cast %65 : vector<1x32xf32> to vector<1x32x1xf32>
    %67 = vector.broadcast %cst_3 : f32 to vector<1x32x1xf32>
    %68 = arith.addf %66, %67 : vector<1x32x1xf32>
    %69 = math.log %68 : vector<1x32x1xf32>
    %70 = vector.broadcast %cst_6 : f32 to vector<1x32x1xf32>
    %71 = arith.subf %70, %69 : vector<1x32x1xf32>
    %72 = vector.broadcast %cst_5 : f32 to vector<1x32x1xf32>
    %73 = arith.mulf %72, %71 : vector<1x32x1xf32>
    %74 = math.exp %73 : vector<1x32x1xf32>
    %c3_i32 = arith.constant 3 : i32
    %75 = vector.broadcast %74 : vector<1x32x1xf32> to vector<1x32x64xf32>
    %76 = arith.mulf %0, %75 : vector<1x32x64xf32>
    %cst_13 = arith.constant dense<0.000000e+00> : vector<1x64xf32>
    %77 = vector.multi_reduction <add>, %76, %cst_13 [1] : vector<1x32x64xf32> to vector<1x64xf32>
    %78 = vector.shape_cast %77 : vector<1x64xf32> to vector<1x1x64xf32>
    %79 = vector.broadcast %cst_3 : f32 to vector<1x1x64xf32>
    %80 = arith.addf %78, %79 : vector<1x1x64xf32>
    %81 = math.log %80 : vector<1x1x64xf32>
    %82 = vector.broadcast %cst_4 : f32 to vector<1x1x64xf32>
    %83 = arith.subf %82, %81 : vector<1x1x64xf32>
    %84 = vector.broadcast %cst_5 : f32 to vector<1x1x64xf32>
    %85 = arith.mulf %84, %83 : vector<1x1x64xf32>
    %86 = math.exp %85 : vector<1x1x64xf32>
    %87 = vector.broadcast %86 : vector<1x1x64xf32> to vector<1x32x64xf32>
    %88 = arith.mulf %0, %87 : vector<1x32x64xf32>
    %cst_14 = arith.constant dense<0.000000e+00> : vector<1x32xf32>
    %89 = vector.multi_reduction <add>, %88, %cst_14 [2] : vector<1x32x64xf32> to vector<1x32xf32>
    %90 = vector.shape_cast %89 : vector<1x32xf32> to vector<1x32x1xf32>
    %91 = vector.broadcast %cst_3 : f32 to vector<1x32x1xf32>
    %92 = arith.addf %90, %91 : vector<1x32x1xf32>
    %93 = math.log %92 : vector<1x32x1xf32>
    %94 = vector.broadcast %cst_6 : f32 to vector<1x32x1xf32>
    %95 = arith.subf %94, %93 : vector<1x32x1xf32>
    %96 = vector.broadcast %cst_5 : f32 to vector<1x32x1xf32>
    %97 = arith.mulf %96, %95 : vector<1x32x1xf32>
    %98 = math.exp %97 : vector<1x32x1xf32>
    %c4_i32 = arith.constant 4 : i32
    %99 = vector.broadcast %98 : vector<1x32x1xf32> to vector<1x32x64xf32>
    %100 = arith.mulf %0, %99 : vector<1x32x64xf32>
    %cst_15 = arith.constant dense<0.000000e+00> : vector<1x64xf32>
    %101 = vector.multi_reduction <add>, %100, %cst_15 [1] : vector<1x32x64xf32> to vector<1x64xf32>
    %102 = vector.shape_cast %101 : vector<1x64xf32> to vector<1x1x64xf32>
    %103 = vector.broadcast %cst_3 : f32 to vector<1x1x64xf32>
    %104 = arith.addf %102, %103 : vector<1x1x64xf32>
    %105 = math.log %104 : vector<1x1x64xf32>
    %106 = vector.broadcast %cst_4 : f32 to vector<1x1x64xf32>
    %107 = arith.subf %106, %105 : vector<1x1x64xf32>
    %108 = vector.broadcast %cst_5 : f32 to vector<1x1x64xf32>
    %109 = arith.mulf %108, %107 : vector<1x1x64xf32>
    %110 = math.exp %109 : vector<1x1x64xf32>
    %111 = vector.broadcast %110 : vector<1x1x64xf32> to vector<1x32x64xf32>
    %112 = arith.mulf %0, %111 : vector<1x32x64xf32>
    %cst_16 = arith.constant dense<0.000000e+00> : vector<1x32xf32>
    %113 = vector.multi_reduction <add>, %112, %cst_16 [2] : vector<1x32x64xf32> to vector<1x32xf32>
    %114 = vector.shape_cast %113 : vector<1x32xf32> to vector<1x32x1xf32>
    %115 = vector.broadcast %cst_3 : f32 to vector<1x32x1xf32>
    %116 = arith.addf %114, %115 : vector<1x32x1xf32>
    %117 = math.log %116 : vector<1x32x1xf32>
    %118 = vector.broadcast %cst_6 : f32 to vector<1x32x1xf32>
    %119 = arith.subf %118, %117 : vector<1x32x1xf32>
    %120 = vector.broadcast %cst_5 : f32 to vector<1x32x1xf32>
    %121 = arith.mulf %120, %119 : vector<1x32x1xf32>
    %122 = math.exp %121 : vector<1x32x1xf32>
    %123 = vector.broadcast %122 : vector<1x32x1xf32> to vector<1x32x64xf32>
    %124 = arith.mulf %123, %0 : vector<1x32x64xf32>
    %125 = vector.broadcast %110 : vector<1x1x64xf32> to vector<1x32x64xf32>
    %126 = arith.mulf %124, %125 : vector<1x32x64xf32>
    %c0_17 = arith.constant 0 : index
    %c0_18 = arith.constant 0 : index
    %c0_19 = arith.constant 0 : index
    %127 = vector.load %arg2[%c0_17, %c0_18, %c0_19] : memref<1x32x64xf32, #tpu.memory_space<vmem>>, vector<1x32x64xf32>
    tpu.vector_store %arg2[%c0_17, %c0_18, %c0_19], %126 {strides = array<i32>} : memref<1x32x64xf32, #tpu.memory_space<vmem>>, vector<1x32x64xf32>,
    return
  }
  func.func @transform_0(%arg0: i32) -> (i32, i32, i32) {
    %c0_i32 = arith.constant 0 : i32
    %c0_i32_0 = arith.constant 0 : i32
    %c0_i32_1 = arith.constant 0 : i32
    return %arg0, %c0_i32, %c0_i32_0 : i32, i32, i32
  }
  func.func @transform_1(%arg0: i32) -> (i32, i32, i32) {
    %c0_i32 = arith.constant 0 : i32
    %c0_i32_0 = arith.constant 0 : i32
    %c0_i32_1 = arith.constant 0 : i32
    return %arg0, %c0_i32, %c0_i32_0 : i32, i32, i32
  }
}

</mosaic_0001>

<llo_original>
// kernel: tpu_custom_call.1
$region0: #{tpu_custom_call.1}
  #allocation0 [shape = 'u32[]', space=smem, size = 0x4, offset = 0x4, fixed_abs, tag = 'smem constant byte address 0x4 - core index']
  #allocation1 [shape = 'u32[72,128]{1,0:T(1,128)}', space=vmem, size = 0x9000, scoped, tag = 'internal scratch']
  %s0 = inlined_call_operand.hbm [shape: f32[2,32,64], index: 0, kind: input, shape index: {}]
  %s1 = inlined_call_operand.hbm [shape: f32[2,32,64], index: 1, kind: output, shape index: {}]
  %s2 = sld [smem:[#allocation0]]
  $region41: #{tpu_custom_call.1} parent=0
    _
  %s4 = ssub.s32 1, %s2
  %s5 = scalar_select 0, %s4, %s2
  $region1: #{tpu_custom_call.1} parent=0
    #allocation2 [shape = 'u8[32768]{0}', space=vmem, size = 0x8000, scoped, tag = 'input window, operand 0']
    #allocation3 [shape = 's32[2]{0}', space=sflag, size = 0x8, scoped, tag = 'scoped memory for tpu_custom_call.1']
    #allocation4 [shape = 's32[2]{0}', space=sflag, size = 0x8, scoped, tag = 'scoped memory for tpu_custom_call.1']
    #allocation5 [shape = 'u8[32768]{0}', space=vmem, size = 0x8000, scoped, tag = 'output window, operand 0']
    %6 = vsyncpa [#allocation3], 0
    %s7 = scalar_lea.sflag [#allocation3], 1
    %8 = vsyncpa %s7, 0
    %9 = vsyncpa [#allocation4], 0
    %s10 = scalar_lea.sflag [#allocation4], 1
    %11 = vsyncpa %s10, 0
    loop: start=0, step=1, limit=4
    $region2: #{tpu_custom_call.1} parent=1 // loop_pre_header
      _
    $region3: #{tpu_custom_call.1} parent=1 // loop_header
      %s13 = sphi 0, %s17
      %p14 = scmp.ge.s32.totalorder %s13, 4
      %s23 = sphi 0, %s25
      %s26 = sphi 0, %s23
      %s27 = sphi 0, %s26
      %s43 = sphi 0, %s27
      %s49 = sphi 0, %s51
      %s52 = sphi 0, %s49
      %s53 = sphi 0, %s52
      %s69 = sphi 0, %s53
    $region4: #{tpu_custom_call.1} parent=1 // loop_header_branch
      %16 = sbr.rel (%p14) target = $region8
    $region5: #{tpu_custom_call.1} parent=1 // loop_body
      %s18 = ssub.s32 %s13, 1
      %s19 = ssub.s32 %s13, 2
      %s20 = sadd.s32 %s13, 1
      %s21 = ssub.s32 %s13, %s20
      %p22 = scmp.eq.s32.totalorder %s21, 0
      %s24 = sadd.s32 %s23, 1
      %s25 = scalar_select %p22, %s23, %s24
      %p28 = pneg %p22
      %p29 = scmp.eq.s32.totalorder %s13, 1
      %p30 = por %p28, %p29
      %p31 = scmp.ne.s32.totalorder %s23, %s26
      %p32 = scmp.eq.s32.totalorder %s13, 0
      %p33 = por %p31, %p32
      %p34 = scmp.ne.s32.totalorder %s23, %s26
      %p35 = scmp.eq.s32.totalorder %s18, 1
      %p36 = por %p34, %p35
      %p37 = scmp.ne.s32.totalorder %s26, %s27
      %p38 = scmp.eq.s32.totalorder %s18, 0
      %p39 = por %p37, %p38
      %p40 = scmp.ne.s32.totalorder %s26, %s27
      %p41 = scmp.eq.s32.totalorder %s19, 1
      %p42 = por %p40, %p41
      %p44 = scmp.ne.s32.totalorder %s27, %s43
      %p45 = scmp.eq.s32.totalorder %s19, 0
      %p46 = por %p44, %p45
      %s47 = ssub.s32 %s13, %s20
      %p48 = scmp.eq.s32.totalorder %s47, 0
      %s50 = sadd.s32 %s49, 1
      %s51 = scalar_select %p48, %s49, %s50
      %p54 = pneg %p48
      %p55 = scmp.eq.s32.totalorder %s13, 1
      %p56 = por %p54, %p55
      %p57 = scmp.ne.s32.totalorder %s49, %s52
      %p58 = scmp.eq.s32.totalorder %s13, 0
      %p59 = por %p57, %p58
      %p60 = scmp.ne.s32.totalorder %s49, %s52
      %p61 = scmp.eq.s32.totalorder %s18, 1
      %p62 = por %p60, %p61
      %p63 = scmp.ne.s32.totalorder %s52, %s53
      %p64 = scmp.eq.s32.totalorder %s18, 0
      %p65 = por %p63, %p64
      %p66 = scmp.ne.s32.totalorder %s52, %s53
      %p67 = scmp.eq.s32.totalorder %s19, 1
      %p68 = por %p66, %p67
      %p70 = scmp.ne.s32.totalorder %s53, %s69
      %p71 = scmp.eq.s32.totalorder %s19, 0
      %p72 = por %p70, %p71
      %p73 = scmp.le.s32.totalorder 1, %s13
      %p74 = scmp.lt.s32.totalorder %s13, 3
      %p75 = pnand %p73, %p74
      %p76 = pneg %p75
      // Predicated region
      $region9: #{tpu_custom_call.1} parent=5 // pred_check
        _
      $region10: #{tpu_custom_call.1} parent=5 // pred_check_branch
        %78 = sbr.rel (%p75) target = $region12
      $region11: #{tpu_custom_call.1} parent=5 // pred_region
        %s79 = ssub.s32 %s13, 1
      $region12: #{tpu_custom_call.1} parent=5 // pred_fallthru
        _
      %p80 = scmp.lt.s32.totalorder %s13, 2
      // Predicated region
      $region13: #{tpu_custom_call.1} parent=5 // pred_check
        %p81 = pneg %p80
      $region14: #{tpu_custom_call.1} parent=5 // pred_check_branch
        %83 = sbr.rel (%p81) target = $region16
      $region15: #{tpu_custom_call.1} parent=5 // pred_region
        // Predicated region
        $region17: #{tpu_custom_call.1} parent=15 // pred_check
          %p84 = pneg %p33
        $region18: #{tpu_custom_call.1} parent=15 // pred_check_branch
          %86 = sbr.rel (%p84) target = $region20
        $region19: #{tpu_custom_call.1} parent=15 // pred_region
          %s87 = sand.u32 %s23, 1
          %s88 = scalar_lea.sflag [#allocation3], %s87
          %s89 = sand.u32 %s23, 1
          %s90 = smul.addr %s89, 32
          %s91 = scalar_lea.vmem [#allocation2], %s90
          %93 = vsyncadd %s88, 0
          %s94 = smul.addr %s13, 4
          %s95 = smul.addr %s94, 8
          %s96 = scalar_lea.hbm %s0, %s95
          %s97 = sshll.u32 %s96, 4
          %s98 = int_to_ptr.hbm [resolvable:$true] %s97
          %s99 = sshll.u32 %s91, 4
          %s100 = int_to_ptr.vmem [resolvable:$true] %s99
          %105 = dma.hbm_to_vmem [thread:$0]  %s98, 512, %s100, %s88, 128, 128, 8
        $region20: #{tpu_custom_call.1} parent=15 // pred_fallthru
          _
      $region16: #{tpu_custom_call.1} parent=5 // pred_fallthru
        _
      %p106 = scmp.le.s32.totalorder 1, %s13
      %p107 = scmp.lt.s32.totalorder %s13, 3
      %p108 = pnand %p106, %p107
      %p109 = pneg %p108
      // Predicated region
      $region21: #{tpu_custom_call.1} parent=5 // pred_check
        _
      $region22: #{tpu_custom_call.1} parent=5 // pred_check_branch
        %111 = sbr.rel (%p108) target = $region24
      $region23: #{tpu_custom_call.1} parent=5 // pred_region
        %s112 = ssub.s32 %s13, 1
        %s113 = sand.u32 %s26, 1
        %s114 = scalar_lea.sflag [#allocation3], %s113
        %s115 = sand.u32 %s26, 1
        %s116 = smul.addr %s115, 32
        %s117 = scalar_lea.vmem [#allocation2], %s116
        // Predicated region
        $region25: #{tpu_custom_call.1} parent=23 // pred_check
          %p118 = pneg %p39
        $region26: #{tpu_custom_call.1} parent=23 // pred_check_branch
          %120 = sbr.rel (%p118) target = $region28
        $region27: #{tpu_custom_call.1} parent=23 // pred_region
          %122 = dma.done %s114, 512
        $region28: #{tpu_custom_call.1} parent=23 // pred_fallthru
          _
        %s123 = sand.u32 %s26, 1
        %s124 = scalar_lea.sflag [#allocation3], %s123
        %s125 = sand.u32 %s26, 1
        %s126 = smul.addr %s125, 32
        %s127 = scalar_lea.vmem [#allocation2], %s126
        %p128 = pneg %p39
        %p129 = pneg %p36
        %p130 = pneg %p65
        %p131 = pneg %p62
        %s132 = sand.u32 %s52, 1
        %s133 = scalar_lea.sflag [#allocation4], %s132
        %s134 = sand.u32 %s52, 1
        %s135 = smul.addr %s134, 32
        %s136 = scalar_lea.vmem [#allocation5], %s135
        %v137 = vld [vmem:[%s117] sm:$0xff]
        %v138 = vld [vmem:[%s117 + $0x8] sm:$0xff]
        %v139 = vld [vmem:[%s117 + $0x10] sm:$0xff]
        %v140 = vld [vmem:[%s117 + $0x18] sm:$0xff]
        %v141 = vmul.f32 %v137, 0.03125
        %v142 = vmul.f32 %v138, 0.03125
        %v143 = vmul.f32 %v139, 0.03125
        %v144 = vmul.f32 %v140, 0.03125
        %vm145 = vcmask 523264
        %v146 = vsel %vm145, %v141, 0.0
        %v147 = vsel %vm145, %v142, 0.0
        %v148 = vadd.f32 %v146, %v147
        %v149 = vsel %vm145, %v143, 0.0
        %v150 = vadd.f32 %v148, %v149
        %v151 = vsel %vm145, %v144, 0.0
        %v152 = vadd.f32 %v150, %v151
        %v153 = vrot.slane %v152, 4
        %v154 = vadd.f32 %v152, %v153
        %v155 = vrot.slane %v154, 2
        %v156 = vadd.f32 %v154, %v155
        %v157 = vrot.slane %v156, 1
        %v158 = vadd.f32 %v156, %v157
        %v159 = vadd.f32 %v158, 1e-08
        %v160 = vlog2.pop %v159
        %v161 = vmul.f32 %v160, 0.6931472
        %v162 = vsub.f32 -4.158883, %v161
        %v163 = vmul.f32 %v162, 0.90909094
        %v164 = vmul.f32 %v163, 1.442695
        %v165 = vpow.pop %v164
        %v166 = vmul.f32 %v137, %v165
        %v167 = vmul.f32 %v138, %v165
        %v168 = vmul.f32 %v139, %v165
        %v169 = vmul.f32 %v140, %v165
        %v170 = vsel %vm145, %v166, 0.0
        %171 = vadd.xlane.f32.xlu0 %v170
        %v172 = vpop.xlane.xlu0 %171
        %v173 = vsel %vm145, %v167, 0.0
        %174 = vadd.xlane.f32.xlu0 %v173
        %v175 = vpop.xlane.xlu0 %174
        %v176 = vsel %vm145, %v168, 0.0
        %177 = vadd.xlane.f32.xlu0 %v176
        %v178 = vpop.xlane.xlu0 %177
        %v179 = vsel %vm145, %v169, 0.0
        %180 = vadd.xlane.f32.xlu0 %v179
        %v181 = vpop.xlane.xlu0 %180
        %v182 = vadd.f32 %v172, 1e-08
        %v183 = vadd.f32 %v175, 1e-08
        %v184 = vadd.f32 %v178, 1e-08
        %v185 = vadd.f32 %v181, 1e-08
        %v186 = vlog2.pop %v182
        %v187 = vmul.f32 %v186, 0.6931472
        %v188 = vlog2.pop %v183
        %v189 = vmul.f32 %v188, 0.6931472
        %v190 = vlog2.pop %v184
        %v191 = vmul.f32 %v190, 0.6931472
        %v192 = vlog2.pop %v185
        %v193 = vmul.f32 %v192, 0.6931472
        %v194 = vsub.f32 -3.465736, %v187
        %v195 = vsub.f32 -3.465736, %v189
        %v196 = vsub.f32 -3.465736, %v191
        %v197 = vsub.f32 -3.465736, %v193
        %v198 = vmul.f32 %v194, 0.90909094
        %v199 = vmul.f32 %v195, 0.90909094
        %v200 = vmul.f32 %v196, 0.90909094
        %v201 = vmul.f32 %v197, 0.90909094
        %v202 = vmul.f32 %v198, 1.442695
        %v203 = vpow.pop %v202
        %v204 = vmul.f32 %v199, 1.442695
        %v205 = vpow.pop %v204
        %v206 = vmul.f32 %v200, 1.442695
        %v207 = vpow.pop %v206
        %v208 = vmul.f32 %v201, 1.442695
        %v209 = vpow.pop %v208
        %v210 = vmul.f32 %v137, %v203
        %v211 = vmul.f32 %v138, %v205
        %v212 = vmul.f32 %v139, %v207
        %v213 = vmul.f32 %v140, %v209
        %v214 = vsel %vm145, %v210, 0.0
        %v215 = vsel %vm145, %v211, 0.0
        %v216 = vadd.f32 %v214, %v215
        %v217 = vsel %vm145, %v212, 0.0
        %v218 = vadd.f32 %v216, %v217
        %v219 = vsel %vm145, %v213, 0.0
        %v220 = vadd.f32 %v218, %v219
        %v221 = vrot.slane %v220, 4
        %v222 = vadd.f32 %v220, %v221
        %v223 = vrot.slane %v222, 2
        %v224 = vadd.f32 %v222, %v223
        %v225 = vrot.slane %v224, 1
        %v226 = vadd.f32 %v224, %v225
        %v227 = vadd.f32 %v226, 1e-08
        %v228 = vlog2.pop %v227
        %v229 = vmul.f32 %v228, 0.6931472
        %v230 = vsub.f32 -4.158883, %v229
        %v231 = vmul.f32 %v230, 0.90909094
        %v232 = vmul.f32 %v231, 1.442695
        %v233 = vpow.pop %v232
        %v234 = vmul.f32 %v137, %v233
        %v235 = vmul.f32 %v138, %v233
        %v236 = vmul.f32 %v139, %v233
        %v237 = vmul.f32 %v140, %v233
        %v238 = vsel %vm145, %v234, 0.0
        %239 = vadd.xlane.f32.xlu0 %v238
        %v240 = vpop.xlane.xlu0 %239
        %v241 = vsel %vm145, %v235, 0.0
        %242 = vadd.xlane.f32.xlu0 %v241
        %v243 = vpop.xlane.xlu0 %242
        %v244 = vsel %vm145, %v236, 0.0
        %245 = vadd.xlane.f32.xlu0 %v244
        %v246 = vpop.xlane.xlu0 %245
        %v247 = vsel %vm145, %v237, 0.0
        %248 = vadd.xlane.f32.xlu0 %v247
        %v249 = vpop.xlane.xlu0 %248
        %v250 = vadd.f32 %v240, 1e-08
        %v251 = vadd.f32 %v243, 1e-08
        %v252 = vadd.f32 %v246, 1e-08
        %v253 = vadd.f32 %v249, 1e-08
        %v254 = vlog2.pop %v250
        %v255 = vmul.f32 %v254, 0.6931472
        %v256 = vlog2.pop %v251
        %v257 = vmul.f32 %v256, 0.6931472
        %v258 = vlog2.pop %v252
        %v259 = vmul.f32 %v258, 0.6931472
        %v260 = vlog2.pop %v253
        %v261 = vmul.f32 %v260, 0.6931472
        %v262 = vsub.f32 -3.465736, %v255
        %v263 = vsub.f32 -3.465736, %v257
        %v264 = vsub.f32 -3.465736, %v259
        %v265 = vsub.f32 -3.465736, %v261
        %v266 = vmul.f32 %v262, 0.90909094
        %v267 = vmul.f32 %v263, 0.90909094
        %v268 = vmul.f32 %v264, 0.90909094
        %v269 = vmul.f32 %v265, 0.90909094
        %v270 = vmul.f32 %v266, 1.442695
        %v271 = vpow.pop %v270
        %v272 = vmul.f32 %v267, 1.442695
        %v273 = vpow.pop %v272
        %v274 = vmul.f32 %v268, 1.442695
        %v275 = vpow.pop %v274
        %v276 = vmul.f32 %v269, 1.442695
        %v277 = vpow.pop %v276
        %v278 = vmul.f32 %v137, %v271
        %v279 = vmul.f32 %v138, %v273
        %v280 = vmul.f32 %v139, %v275
        %v281 = vmul.f32 %v140, %v277
        %v282 = vsel %vm145, %v278, 0.0
        %v283 = vsel %vm145, %v279, 0.0
        %v284 = vadd.f32 %v282, %v283
        %v285 = vsel %vm145, %v280, 0.0
        %v286 = vadd.f32 %v284, %v285
        %v287 = vsel %vm145, %v281, 0.0
        %v288 = vadd.f32 %v286, %v287
        %v289 = vrot.slane %v288, 4
        %v290 = vadd.f32 %v288, %v289
        %v291 = vrot.slane %v290, 2
        %v292 = vadd.f32 %v290, %v291
        %v293 = vrot.slane %v292, 1
        %v294 = vadd.f32 %v292, %v293
        %v295 = vadd.f32 %v294, 1e-08
        %v296 = vlog2.pop %v295
        %v297 = vmul.f32 %v296, 0.6931472
        %v298 = vsub.f32 -4.158883, %v297
        %v299 = vmul.f32 %v298, 0.90909094
        %v300 = vmul.f32 %v299, 1.442695
        %v301 = vpow.pop %v300
        %v302 = vmul.f32 %v137, %v301
        %v303 = vmul.f32 %v138, %v301
        %v304 = vmul.f32 %v139, %v301
        %v305 = vmul.f32 %v140, %v301
        %v306 = vsel %vm145, %v302, 0.0
        %307 = vadd.xlane.f32.xlu0 %v306
        %v308 = vpop.xlane.xlu0 %307
        %v309 = vsel %vm145, %v303, 0.0
        %310 = vadd.xlane.f32.xlu0 %v309
        %v311 = vpop.xlane.xlu0 %310
        %v312 = vsel %vm145, %v304, 0.0
        %313 = vadd.xlane.f32.xlu0 %v312
        %v314 = vpop.xlane.xlu0 %313
        %v315 = vsel %vm145, %v305, 0.0
        %316 = vadd.xlane.f32.xlu0 %v315
        %v317 = vpop.xlane.xlu0 %316
        %v318 = vadd.f32 %v308, 1e-08
        %v319 = vadd.f32 %v311, 1e-08
        %v320 = vadd.f32 %v314, 1e-08
        %v321 = vadd.f32 %v317, 1e-08
        %v322 = vlog2.pop %v318
        %v323 = vmul.f32 %v322, 0.6931472
        %v324 = vlog2.pop %v319
        %v325 = vmul.f32 %v324, 0.6931472
        %v326 = vlog2.pop %v320
        %v327 = vmul.f32 %v326, 0.6931472
        %v328 = vlog2.pop %v321
        %v329 = vmul.f32 %v328, 0.6931472
        %v330 = vsub.f32 -3.465736, %v323
        %v331 = vsub.f32 -3.465736, %v325
        %v332 = vsub.f32 -3.465736, %v327
        %v333 = vsub.f32 -3.465736, %v329
        %v334 = vmul.f32 %v330, 0.90909094
        %v335 = vmul.f32 %v331, 0.90909094
        %v336 = vmul.f32 %v332, 0.90909094
        %v337 = vmul.f32 %v333, 0.90909094
        %v338 = vmul.f32 %v334, 1.442695
        %v339 = vpow.pop %v338
        %v340 = vmul.f32 %v335, 1.442695
        %v341 = vpow.pop %v340
        %v342 = vmul.f32 %v336, 1.442695
        %v343 = vpow.pop %v342
        %v344 = vmul.f32 %v337, 1.442695
        %v345 = vpow.pop %v344
        %v346 = vmul.f32 %v137, %v339
        %v347 = vmul.f32 %v138, %v341
        %v348 = vmul.f32 %v139, %v343
        %v349 = vmul.f32 %v140, %v345
        %v350 = vsel %vm145, %v346, 0.0
        %v351 = vsel %vm145, %v347, 0.0
        %v352 = vadd.f32 %v350, %v351
        %v353 = vsel %vm145, %v348, 0.0
        %v354 = vadd.f32 %v352, %v353
        %v355 = vsel %vm145, %v349, 0.0
        %v356 = vadd.f32 %v354, %v355
        %v357 = vrot.slane %v356, 4
        %v358 = vadd.f32 %v356, %v357
        %v359 = vrot.slane %v358, 2
        %v360 = vadd.f32 %v358, %v359
        %v361 = vrot.slane %v360, 1
        %v362 = vadd.f32 %v360, %v361
        %v363 = vadd.f32 %v362, 1e-08
        %v364 = vlog2.pop %v363
        %v365 = vmul.f32 %v364, 0.6931472
        %v366 = vsub.f32 -4.158883, %v365
        %v367 = vmul.f32 %v366, 0.90909094
        %v368 = vmul.f32 %v367, 1.442695
        %v369 = vpow.pop %v368
        %v370 = vmul.f32 %v137, %v369
        %v371 = vmul.f32 %v138, %v369
        %v372 = vmul.f32 %v139, %v369
        %v373 = vmul.f32 %v140, %v369
        %v374 = vsel %vm145, %v370, 0.0
        %375 = vadd.xlane.f32.xlu0 %v374
        %v376 = vpop.xlane.xlu0 %375
        %v377 = vsel %vm145, %v371, 0.0
        %378 = vadd.xlane.f32.xlu0 %v377
        %v379 = vpop.xlane.xlu0 %378
        %v380 = vsel %vm145, %v372, 0.0
        %381 = vadd.xlane.f32.xlu0 %v380
        %v382 = vpop.xlane.xlu0 %381
        %v383 = vsel %vm145, %v373, 0.0
        %384 = vadd.xlane.f32.xlu0 %v383
        %v385 = vpop.xlane.xlu0 %384
        %v386 = vadd.f32 %v376, 1e-08
        %v387 = vadd.f32 %v379, 1e-08
        %v388 = vadd.f32 %v382, 1e-08
        %v389 = vadd.f32 %v385, 1e-08
        %v390 = vlog2.pop %v386
        %v391 = vmul.f32 %v390, 0.6931472
        %v392 = vlog2.pop %v387
        %v393 = vmul.f32 %v392, 0.6931472
        %v394 = vlog2.pop %v388
        %v395 = vmul.f32 %v394, 0.6931472
        %v396 = vlog2.pop %v389
        %v397 = vmul.f32 %v396, 0.6931472
        %v398 = vsub.f32 -3.465736, %v391
        %v399 = vsub.f32 -3.465736, %v393
        %v400 = vsub.f32 -3.465736, %v395
        %v401 = vsub.f32 -3.465736, %v397
        %v402 = vmul.f32 %v398, 0.90909094
        %v403 = vmul.f32 %v399, 0.90909094
        %v404 = vmul.f32 %v400, 0.90909094
        %v405 = vmul.f32 %v401, 0.90909094
        %v406 = vmul.f32 %v402, 1.442695
        %v407 = vpow.pop %v406
        %v408 = vmul.f32 %v403, 1.442695
        %v409 = vpow.pop %v408
        %v410 = vmul.f32 %v404, 1.442695
        %v411 = vpow.pop %v410
        %v412 = vmul.f32 %v405, 1.442695
        %v413 = vpow.pop %v412
        %v414 = vmul.f32 %v137, %v407
        %v415 = vmul.f32 %v138, %v409
        %v416 = vmul.f32 %v139, %v411
        %v417 = vmul.f32 %v140, %v413
        %v418 = vsel %vm145, %v414, 0.0
        %v419 = vsel %vm145, %v415, 0.0
        %v420 = vadd.f32 %v418, %v419
        %v421 = vsel %vm145, %v416, 0.0
        %v422 = vadd.f32 %v420, %v421
        %v423 = vsel %vm145, %v417, 0.0
        %v424 = vadd.f32 %v422, %v423
        %v425 = vrot.slane %v424, 4
        %v426 = vadd.f32 %v424, %v425
        %v427 = vrot.slane %v426, 2
        %v428 = vadd.f32 %v426, %v427
        %v429 = vrot.slane %v428, 1
        %v430 = vadd.f32 %v428, %v429
        %v431 = vadd.f32 %v430, 1e-08
        %v432 = vlog2.pop %v431
        %v433 = vmul.f32 %v432, 0.6931472
        %v434 = vsub.f32 -4.158883, %v433
        %v435 = vmul.f32 %v434, 0.90909094
        %v436 = vmul.f32 %v435, 1.442695
        %v437 = vpow.pop %v436
        %v438 = vmul.f32 %v137, %v437
        %v439 = vmul.f32 %v138, %v437
        %v440 = vmul.f32 %v139, %v437
        %v441 = vmul.f32 %v140, %v437
        %v442 = vsel %vm145, %v438, 0.0
        %443 = vadd.xlane.f32.xlu0 %v442
        %v444 = vpop.xlane.xlu0 %443
        %v445 = vsel %vm145, %v439, 0.0
        %446 = vadd.xlane.f32.xlu0 %v445
        %v447 = vpop.xlane.xlu0 %446
        %v448 = vsel %vm145, %v440, 0.0
        %449 = vadd.xlane.f32.xlu0 %v448
        %v450 = vpop.xlane.xlu0 %449
        %v451 = vsel %vm145, %v441, 0.0
        %452 = vadd.xlane.f32.xlu0 %v451
        %v453 = vpop.xlane.xlu0 %452
        %v454 = vadd.f32 %v444, 1e-08
        %v455 = vadd.f32 %v447, 1e-08
        %v456 = vadd.f32 %v450, 1e-08
        %v457 = vadd.f32 %v453, 1e-08
        %v458 = vlog2.pop %v454
        %v459 = vmul.f32 %v458, 0.6931472
        %v460 = vlog2.pop %v455
        %v461 = vmul.f32 %v460, 0.6931472
        %v462 = vlog2.pop %v456
        %v463 = vmul.f32 %v462, 0.6931472
        %v464 = vlog2.pop %v457
        %v465 = vmul.f32 %v464, 0.6931472
        %v466 = vsub.f32 -3.465736, %v459
        %v467 = vsub.f32 -3.465736, %v461
        %v468 = vsub.f32 -3.465736, %v463
        %v469 = vsub.f32 -3.465736, %v465
        %v470 = vmul.f32 %v466, 0.90909094
        %v471 = vmul.f32 %v467, 0.90909094
        %v472 = vmul.f32 %v468, 0.90909094
        %v473 = vmul.f32 %v469, 0.90909094
        %v474 = vmul.f32 %v470, 1.442695
        %v475 = vpow.pop %v474
        %v476 = vmul.f32 %v471, 1.442695
        %v477 = vpow.pop %v476
        %v478 = vmul.f32 %v472, 1.442695
        %v479 = vpow.pop %v478
        %v480 = vmul.f32 %v473, 1.442695
        %v481 = vpow.pop %v480
        %v482 = vmul.f32 %v475, %v137
        %v483 = vmul.f32 %v477, %v138
        %v484 = vmul.f32 %v479, %v139
        %v485 = vmul.f32 %v481, %v140
        %v486 = vmul.f32 %v482, %v437
        %v487 = vmul.f32 %v483, %v437
        %v488 = vmul.f32 %v484, %v437
        %v489 = vmul.f32 %v485, %v437
        %490 = vst.msk [vmem:[%s136] sm:$0xff] %vm145, %v486
        %491 = vst.msk [vmem:[%s136 + $0x8] sm:$0xff] %vm145, %v487
        %492 = vst.msk [vmem:[%s136 + $0x10] sm:$0xff] %vm145, %v488
        %493 = vst.msk [vmem:[%s136 + $0x18] sm:$0xff] %vm145, %v489
        %s494 = sand.u32 %s52, 1
        %s495 = scalar_lea.sflag [#allocation4], %s494
        %s496 = sand.u32 %s52, 1
        %s497 = smul.addr %s496, 32
        %s498 = scalar_lea.vmem [#allocation5], %s497
        // Predicated region
        $region29: #{tpu_custom_call.1} parent=23 // pred_check
          %p499 = pneg %p62
        $region30: #{tpu_custom_call.1} parent=23 // pred_check_branch
          %501 = sbr.rel (%p499) target = $region32
        $region31: #{tpu_custom_call.1} parent=23 // pred_region
          %503 = vsyncadd %s495, 0
          %s504 = smul.addr %s18, 4
          %s505 = smul.addr %s504, 8
          %s506 = scalar_lea.hbm %s1, %s505
          %s507 = sshll.u32 %s498, 4
          %s508 = int_to_ptr.vmem [resolvable:$true] %s507
          %s509 = sshll.u32 %s506, 4
          %s510 = int_to_ptr.hbm [resolvable:$true] %s509
          %515 = dma.vmem_to_hbm [thread:$0]  %s508, 512, %s510, %s495, 128, 128, 8
        $region32: #{tpu_custom_call.1} parent=23 // pred_fallthru
          _
      $region24: #{tpu_custom_call.1} parent=5 // pred_fallthru
        _
      %p516 = scmp.le.s32.totalorder 2, %s13
      // Predicated region
      $region33: #{tpu_custom_call.1} parent=5 // pred_check
        %p517 = pneg %p516
      $region34: #{tpu_custom_call.1} parent=5 // pred_check_branch
        %519 = sbr.rel (%p517) target = $region36
      $region35: #{tpu_custom_call.1} parent=5 // pred_region
        %s520 = ssub.s32 %s13, 2
        // Predicated region
        $region37: #{tpu_custom_call.1} parent=35 // pred_check
          %p521 = pneg %p68
        $region38: #{tpu_custom_call.1} parent=35 // pred_check_branch
          %523 = sbr.rel (%p521) target = $region40
        $region39: #{tpu_custom_call.1} parent=35 // pred_region
          %s524 = sand.u32 %s53, 1
          %s525 = scalar_lea.sflag [#allocation4], %s524
          %s526 = sand.u32 %s53, 1
          %s527 = smul.addr %s526, 32
          %s528 = scalar_lea.vmem [#allocation5], %s527
          %530 = dma.done %s525, 512
        $region40: #{tpu_custom_call.1} parent=35 // pred_fallthru
          _
      $region36: #{tpu_custom_call.1} parent=5 // pred_fallthru
        _
    $region6: #{tpu_custom_call.1} parent=1 // loop_footer
      %s17 = sadd.s32 1, %s13
    $region7: #{tpu_custom_call.1} parent=1 // loop_footer_branch
      %12 = sbr.rel target = $region3
    $region8: #{tpu_custom_call.1} parent=1 // loop_exit
      _
    %531 = vsyncpa [#allocation3], 1
    %s532 = scalar_lea.sflag [#allocation3], 1
    %533 = vsyncpa %s532, 1
    %534 = vsyncpa [#allocation4], 1
    %s535 = scalar_lea.sflag [#allocation4], 1
    %536 = vsyncpa %s535, 1

</llo_original>
